<compile_context>
chip_gen: v7x
topology: tpu7x:2x2x1
jax: 0.10.0
libtpu: 0.0.40
codegen_flags: <defaults>
</compile_context>

<pallas_src>
import numpy as np
import jax
import jax.numpy as jnp
from jax.experimental import pallas as pl
from jax.experimental.pallas import tpu as pltpu


# ---------------------------------------------------------------------------
# Kernel factory: one grid step gathers `rows_per_block` prototype rows
# (selected by SMEM labels) from the VMEM-resident table into one output tile.
# ---------------------------------------------------------------------------
def _make_gather_kernel(rows_per_block, num_classes):
    def kernel(labels_ref, proto_ref, out_ref):
        # labels_ref : (B_pad,) int32 in SMEM (scalar prefetch)
        # proto_ref  : (C, F) whole prototype table, VMEM-resident
        # out_ref    : (rows_per_block, F) output tile for this grid step
        base = pl.program_id(0) * rows_per_block
        for r in range(rows_per_block):            # static, unrolled
            lab = labels_ref[base + r]
            # Fold the bounds clamp into the kernel (no extra XLA op on the
            # per-call path; guards against OOB VMEM reads).
            lab = jnp.minimum(jnp.maximum(lab, 0), num_classes - 1)
            out_ref[pl.ds(r, 1), :] = proto_ref[pl.ds(lab, 1), :]
    return kernel


# ---------------------------------------------------------------------------
# One-time prototype preparation (hoists the transpose out of forward).
# ---------------------------------------------------------------------------
def prepare_proto(proto):
    """proto: (feat_in, num_classes) -> (num_classes, feat_in). Call once at init."""
    return jnp.transpose(proto)


# ---------------------------------------------------------------------------
# Forward: labels (B,) int, proto_t (C, feat_in) -> (B, feat_in)
# ---------------------------------------------------------------------------
def proto_classifier_forward(labels, proto_t):
    B = labels.shape[0]
    C, F = proto_t.shape
    itemsize = jnp.dtype(proto_t.dtype).itemsize

    # Very large prototype tables cannot stay VMEM-resident.
    if C * F * itemsize > 96 * 1024 * 1024:
        # TODO(synk): streaming manual-DMA gather (batched row copies into a
        # VMEM scratch) for prototypes that do not fit in VMEM.
        return jnp.take(proto_t, jnp.asarray(labels, jnp.int32), axis=0)

    rows_per_block = 16 if itemsize == 2 else 8       # full sublane packing
    n_blocks = (B + rows_per_block - 1) // rows_per_block
    b_pad = n_blocks * rows_per_block

    labels_i32 = jnp.asarray(labels, jnp.int32)
    if b_pad != B:
        labels_i32 = jnp.pad(labels_i32, (0, b_pad - B))

    # Resident table + double-buffered output tile + margin.
    vmem_needed = C * F * itemsize + 2 * rows_per_block * F * itemsize + (2 << 20)
    vmem_limit = int(min(100 << 20, max(16 << 20, vmem_needed)))

    out = pl.pallas_call(
        _make_gather_kernel(rows_per_block, C),
        out_shape=jax.ShapeDtypeStruct((b_pad, F), proto_t.dtype),
        grid_spec=pltpu.PrefetchScalarGridSpec(
            num_scalar_prefetch=1,
            grid=(n_blocks,),
            in_specs=[
                # Whole prototype table, DMA'd once and kept in VMEM.
                pl.BlockSpec(memory_space=pltpu.MemorySpace.VMEM),
            ],
            out_specs=pl.BlockSpec((rows_per_block, F), lambda i, lab: (i, 0)),
        ),
        compiler_params=pltpu.CompilerParams(
            dimension_semantics=("parallel",),
            vmem_limit_bytes=vmem_limit,
        ),
    )(labels_i32, proto_t)

    if b_pad != B:
        out = out[:B]
    return out


# ---------------------------------------------------------------------------
# Deterministic re-implementation of Proto_Classifier.__init__ (host-side).
# ---------------------------------------------------------------------------
def make_proto(feat_in, num_classes, seed=0):
    rng = np.random.default_rng(seed)
    a = rng.random(size=(feat_in, num_classes))
    P, _ = np.linalg.qr(a)                                # orthonormal columns
    assert np.allclose(P.T @ P, np.eye(num_classes), atol=1e-6)
    I = np.eye(num_classes)
    one = np.ones((num_classes, num_classes))
    M = np.sqrt(num_classes / (num_classes - 1)) * (P @ (I - one / num_classes))
    return jnp.asarray(M, dtype=jnp.float32)              # (feat_in, num_classes)


if __name__ == "__main__":
    feat_in = 128
    num_classes = 16
    batch = 16

    proto = make_proto(feat_in, num_classes, seed=0)      # (feat_in, C)
    proto_t = prepare_proto(proto)                        # (C, feat_in) -- done once

    key = jax.random.PRNGKey(0)
    labels = jax.random.randint(key, (batch,), 0, num_classes, dtype=jnp.int32)

    out = proto_classifier_forward(labels, proto_t)
    out = jax.block_until_ready(out)

    # Reference: proto[:, label].T
    ref = jnp.transpose(proto[:, labels])
    assert out.shape == (batch, feat_in), out.shape
    assert jnp.allclose(out, ref, atol=1e-6), float(jnp.max(jnp.abs(out - ref)))

    print("KERNEL_OK")
</pallas_src>

<mosaic_0001>
module attributes {stable_mosaic.version = 11 : i64} {
  func.func @kernel(%arg0: i32, %arg1: memref<16xi32, #tpu.memory_space<smem>>, %arg2: memref<16x128xf32, #tpu.memory_space<vmem>>, %arg3: memref<8x128xf32, #tpu.memory_space<vmem>>) attributes {dimension_semantics = [#tpu.dimension_semantics<parallel>], iteration_bounds = array<i64: 2>, scalar_prefetch = 1 : i64, scratch_operands = 0 : i64, tpu.core_type = #tpu.core_type<tc>, window_params = [{pipeline_mode = #tpu.pipeline_mode<synchronous>, transform_indices = @transform_0, window_bounds = array<i64: 16, 128>}, {transform_indices = @transform_1, window_bounds = array<i64: 8, 128>}]} {
    %c8_i32 = arith.constant 8 : i32
    %0 = arith.muli %arg0, %c8_i32 : i32
    %c0_i32 = arith.constant 0 : i32
    %1 = arith.addi %0, %c0_i32 : i32
    %2 = arith.index_cast %1 : i32 to index
    %3 = memref.load %arg1[%2] : memref<16xi32, #tpu.memory_space<smem>>
    %c0_i32_0 = arith.constant 0 : i32
    %4 = arith.maxsi %3, %c0_i32_0 : i32
    %c15_i32 = arith.constant 15 : i32
    %5 = arith.minsi %4, %c15_i32 : i32
    %6 = arith.index_cast %5 : i32 to index
    %c0 = arith.constant 0 : index
    %7 = vector.load %arg2[%6, %c0] : memref<16x128xf32, #tpu.memory_space<vmem>>, vector<1x128xf32>
    %c0_1 = arith.constant 0 : index
    %c0_2 = arith.constant 0 : index
    %8 = vector.load %arg3[%c0_1, %c0_2] : memref<8x128xf32, #tpu.memory_space<vmem>>, vector<1x128xf32>
    tpu.vector_store %arg3[%c0_1, %c0_2], %7 {strides = array<i32>} : memref<8x128xf32, #tpu.memory_space<vmem>>, vector<1x128xf32>,
    %c1_i32 = arith.constant 1 : i32
    %9 = arith.addi %0, %c1_i32 : i32
    %10 = arith.index_cast %9 : i32 to index
    %11 = memref.load %arg1[%10] : memref<16xi32, #tpu.memory_space<smem>>
    %c0_i32_3 = arith.constant 0 : i32
    %12 = arith.maxsi %11, %c0_i32_3 : i32
    %c15_i32_4 = arith.constant 15 : i32
    %13 = arith.minsi %12, %c15_i32_4 : i32
    %14 = arith.index_cast %13 : i32 to index
    %c0_5 = arith.constant 0 : index
    %15 = vector.load %arg2[%14, %c0_5] : memref<16x128xf32, #tpu.memory_space<vmem>>, vector<1x128xf32>
    %c1 = arith.constant 1 : index
    %c0_6 = arith.constant 0 : index
    %16 = vector.load %arg3[%c1, %c0_6] : memref<8x128xf32, #tpu.memory_space<vmem>>, vector<1x128xf32>
    tpu.vector_store %arg3[%c1, %c0_6], %15 {strides = array<i32>} : memref<8x128xf32, #tpu.memory_space<vmem>>, vector<1x128xf32>,
    %c2_i32 = arith.constant 2 : i32
    %17 = arith.addi %0, %c2_i32 : i32
    %18 = arith.index_cast %17 : i32 to index
    %19 = memref.load %arg1[%18] : memref<16xi32, #tpu.memory_space<smem>>
    %c0_i32_7 = arith.constant 0 : i32
    %20 = arith.maxsi %19, %c0_i32_7 : i32
    %c15_i32_8 = arith.constant 15 : i32
    %21 = arith.minsi %20, %c15_i32_8 : i32
    %22 = arith.index_cast %21 : i32 to index
    %c0_9 = arith.constant 0 : index
    %23 = vector.load %arg2[%22, %c0_9] : memref<16x128xf32, #tpu.memory_space<vmem>>, vector<1x128xf32>
    %c2 = arith.constant 2 : index
    %c0_10 = arith.constant 0 : index
    %24 = vector.load %arg3[%c2, %c0_10] : memref<8x128xf32, #tpu.memory_space<vmem>>, vector<1x128xf32>
    tpu.vector_store %arg3[%c2, %c0_10], %23 {strides = array<i32>} : memref<8x128xf32, #tpu.memory_space<vmem>>, vector<1x128xf32>,
    %c3_i32 = arith.constant 3 : i32
    %25 = arith.addi %0, %c3_i32 : i32
    %26 = arith.index_cast %25 : i32 to index
    %27 = memref.load %arg1[%26] : memref<16xi32, #tpu.memory_space<smem>>
    %c0_i32_11 = arith.constant 0 : i32
    %28 = arith.maxsi %27, %c0_i32_11 : i32
    %c15_i32_12 = arith.constant 15 : i32
    %29 = arith.minsi %28, %c15_i32_12 : i32
    %30 = arith.index_cast %29 : i32 to index
    %c0_13 = arith.constant 0 : index
    %31 = vector.load %arg2[%30, %c0_13] : memref<16x128xf32, #tpu.memory_space<vmem>>, vector<1x128xf32>
    %c3 = arith.constant 3 : index
    %c0_14 = arith.constant 0 : index
    %32 = vector.load %arg3[%c3, %c0_14] : memref<8x128xf32, #tpu.memory_space<vmem>>, vector<1x128xf32>
    tpu.vector_store %arg3[%c3, %c0_14], %31 {strides = array<i32>} : memref<8x128xf32, #tpu.memory_space<vmem>>, vector<1x128xf32>,
    %c4_i32 = arith.constant 4 : i32
    %33 = arith.addi %0, %c4_i32 : i32
    %34 = arith.index_cast %33 : i32 to index
    %35 = memref.load %arg1[%34] : memref<16xi32, #tpu.memory_space<smem>>
    %c0_i32_15 = arith.constant 0 : i32
    %36 = arith.maxsi %35, %c0_i32_15 : i32
    %c15_i32_16 = arith.constant 15 : i32
    %37 = arith.minsi %36, %c15_i32_16 : i32
    %38 = arith.index_cast %37 : i32 to index
    %c0_17 = arith.constant 0 : index
    %39 = vector.load %arg2[%38, %c0_17] : memref<16x128xf32, #tpu.memory_space<vmem>>, vector<1x128xf32>
    %c4 = arith.constant 4 : index
    %c0_18 = arith.constant 0 : index
    %40 = vector.load %arg3[%c4, %c0_18] : memref<8x128xf32, #tpu.memory_space<vmem>>, vector<1x128xf32>
    tpu.vector_store %arg3[%c4, %c0_18], %39 {strides = array<i32>} : memref<8x128xf32, #tpu.memory_space<vmem>>, vector<1x128xf32>,
    %c5_i32 = arith.constant 5 : i32
    %41 = arith.addi %0, %c5_i32 : i32
    %42 = arith.index_cast %41 : i32 to index
    %43 = memref.load %arg1[%42] : memref<16xi32, #tpu.memory_space<smem>>
    %c0_i32_19 = arith.constant 0 : i32
    %44 = arith.maxsi %43, %c0_i32_19 : i32
    %c15_i32_20 = arith.constant 15 : i32
    %45 = arith.minsi %44, %c15_i32_20 : i32
    %46 = arith.index_cast %45 : i32 to index
    %c0_21 = arith.constant 0 : index
    %47 = vector.load %arg2[%46, %c0_21] : memref<16x128xf32, #tpu.memory_space<vmem>>, vector<1x128xf32>
    %c5 = arith.constant 5 : index
    %c0_22 = arith.constant 0 : index
    %48 = vector.load %arg3[%c5, %c0_22] : memref<8x128xf32, #tpu.memory_space<vmem>>, vector<1x128xf32>
    tpu.vector_store %arg3[%c5, %c0_22], %47 {strides = array<i32>} : memref<8x128xf32, #tpu.memory_space<vmem>>, vector<1x128xf32>,
    %c6_i32 = arith.constant 6 : i32
    %49 = arith.addi %0, %c6_i32 : i32
    %50 = arith.index_cast %49 : i32 to index
    %51 = memref.load %arg1[%50] : memref<16xi32, #tpu.memory_space<smem>>
    %c0_i32_23 = arith.constant 0 : i32
    %52 = arith.maxsi %51, %c0_i32_23 : i32
    %c15_i32_24 = arith.constant 15 : i32
    %53 = arith.minsi %52, %c15_i32_24 : i32
    %54 = arith.index_cast %53 : i32 to index
    %c0_25 = arith.constant 0 : index
    %55 = vector.load %arg2[%54, %c0_25] : memref<16x128xf32, #tpu.memory_space<vmem>>, vector<1x128xf32>
    %c6 = arith.constant 6 : index
    %c0_26 = arith.constant 0 : index
    %56 = vector.load %arg3[%c6, %c0_26] : memref<8x128xf32, #tpu.memory_space<vmem>>, vector<1x128xf32>
    tpu.vector_store %arg3[%c6, %c0_26], %55 {strides = array<i32>} : memref<8x128xf32, #tpu.memory_space<vmem>>, vector<1x128xf32>,
    %c7_i32 = arith.constant 7 : i32
    %57 = arith.addi %0, %c7_i32 : i32
    %58 = arith.index_cast %57 : i32 to index
    %59 = memref.load %arg1[%58] : memref<16xi32, #tpu.memory_space<smem>>
    %c0_i32_27 = arith.constant 0 : i32
    %60 = arith.maxsi %59, %c0_i32_27 : i32
    %c15_i32_28 = arith.constant 15 : i32
    %61 = arith.minsi %60, %c15_i32_28 : i32
    %62 = arith.index_cast %61 : i32 to index
    %c0_29 = arith.constant 0 : index
    %63 = vector.load %arg2[%62, %c0_29] : memref<16x128xf32, #tpu.memory_space<vmem>>, vector<1x128xf32>
    %c7 = arith.constant 7 : index
    %c0_30 = arith.constant 0 : index
    %64 = vector.load %arg3[%c7, %c0_30] : memref<8x128xf32, #tpu.memory_space<vmem>>, vector<1x128xf32>
    tpu.vector_store %arg3[%c7, %c0_30], %63 {strides = array<i32>} : memref<8x128xf32, #tpu.memory_space<vmem>>, vector<1x128xf32>,
    return
  }
  func.func @transform_0(%arg0: i32, %arg1: memref<16xi32, #tpu.memory_space<smem>>) -> (i32, i32) {
    %c0_i32 = arith.constant 0 : i32
    %c0_i32_0 = arith.constant 0 : i32
    %c0_i32_1 = arith.constant 0 : i32
    return %c0_i32, %c0_i32_0 : i32, i32
  }
  func.func @transform_1(%arg0: i32, %arg1: memref<16xi32, #tpu.memory_space<smem>>) -> (i32, i32) {
    %c0_i32 = arith.constant 0 : i32
    %c0_i32_0 = arith.constant 0 : i32
    return %arg0, %c0_i32 : i32, i32
  }
}

</mosaic_0001>

<llo_original>
// kernel: tpu_custom_call.1
$region0: #{tpu_custom_call.1}
  #allocation0 [shape = 'u32[]', space=smem, size = 0x4, offset = 0x4, fixed_abs, tag = 'smem constant byte address 0x4 - core index']
  #allocation1 [shape = 'u32[144,128]{1,0:T(1,128)}', space=vmem, size = 0x12000, scoped, tag = 'internal scratch']
  #allocation2 [shape = 's32[1]{0}', space=sflag, size = 0x4, scoped, tag = 'scoped memory for tpu_custom_call.1']
  #allocation3 [shape = 'u8[512]{0}', space=smem, size = 0x200, scoped, tag = 'prefetched SMEM operand 0']
  %s0 = inlined_call_operand.hbm [shape: s32[16], index: 0, kind: input, shape index: {}]
  %s1 = inlined_call_operand.hbm [shape: f32[16,128], index: 1, kind: input, shape index: {}]
  %s2 = inlined_call_operand.hbm [shape: f32[16,128], index: 2, kind: output, shape index: {}]
  %s3 = sld [smem:[#allocation0]]
  $region41: #{tpu_custom_call.1} parent=0
    _
  %s5 = ssub.s32 1, %s3
  %s6 = scalar_select 0, %s5, %s3
  %8 = dma.hbm_to_smem %s0, 16, [#allocation3], [#allocation2]
  %9 = dma.done [#allocation2], 16
  %10 = sfence
  $region1: #{tpu_custom_call.1} parent=0
    #allocation4 [shape = 'u8[8192]{0}', space=vmem, size = 0x2000, scoped, tag = 'input window, operand 1, single buffered']
    #allocation5 [shape = 's32[2]{0}', space=sflag, size = 0x8, scoped, tag = 'scoped memory for tpu_custom_call.1']
    #allocation6 [shape = 's32[2]{0}', space=sflag, size = 0x8, scoped, tag = 'scoped memory for tpu_custom_call.1']
    #allocation7 [shape = 'u8[8192]{0}', space=vmem, size = 0x2000, scoped, tag = 'output window, operand 0']
    %11 = vsyncpa [#allocation5], 0
    %12 = vsyncpa [#allocation6], 0
    %s13 = scalar_lea.sflag [#allocation6], 1
    %14 = vsyncpa %s13, 0
    loop: start=0, step=1, limit=4
    $region2: #{tpu_custom_call.1} parent=1 // loop_pre_header
      _
    $region3: #{tpu_custom_call.1} parent=1 // loop_header
      %s16 = sphi 0, %s20
      %p17 = scmp.ge.s32.totalorder %s16, 4
      %s24 = sphi 0, %s24
      %s26 = sphi 0, %s24
      %s27 = sphi 0, %s26
      %s41 = sphi 0, %s27
      %s47 = sphi 0, %s49
      %s50 = sphi 0, %s47
      %s51 = sphi 0, %s50
      %s67 = sphi 0, %s51
    $region4: #{tpu_custom_call.1} parent=1 // loop_header_branch
      %19 = sbr.rel (%p17) target = $region8
    $region5: #{tpu_custom_call.1} parent=1 // loop_body
      %s21 = ssub.s32 %s16, 1
      %s22 = ssub.s32 %s16, 2
      %s23 = sadd.s32 %s16, 1
      %s25 = sadd.s32 %s24, 1
      %p28 = scmp.eq.s32.totalorder %s16, 1
      %p29 = scmp.ne.s32.totalorder %s24, %s26
      %p30 = scmp.eq.s32.totalorder %s16, 0
      %p31 = por %p29, %p30
      %p32 = scmp.ne.s32.totalorder %s24, %s26
      %p33 = scmp.eq.s32.totalorder %s21, 1
      %p34 = por %p32, %p33
      %p35 = scmp.ne.s32.totalorder %s26, %s27
      %p36 = scmp.eq.s32.totalorder %s21, 0
      %p37 = por %p35, %p36
      %p38 = scmp.ne.s32.totalorder %s26, %s27
      %p39 = scmp.eq.s32.totalorder %s22, 1
      %p40 = por %p38, %p39
      %p42 = scmp.ne.s32.totalorder %s27, %s41
      %p43 = scmp.eq.s32.totalorder %s22, 0
      %p44 = por %p42, %p43
      %s45 = ssub.s32 %s16, %s23
      %p46 = scmp.eq.s32.totalorder %s45, 0
      %s48 = sadd.s32 %s47, 1
      %s49 = scalar_select %p46, %s47, %s48
      %p52 = pneg %p46
      %p53 = scmp.eq.s32.totalorder %s16, 1
      %p54 = por %p52, %p53
      %p55 = scmp.ne.s32.totalorder %s47, %s50
      %p56 = scmp.eq.s32.totalorder %s16, 0
      %p57 = por %p55, %p56
      %p58 = scmp.ne.s32.totalorder %s47, %s50
      %p59 = scmp.eq.s32.totalorder %s21, 1
      %p60 = por %p58, %p59
      %p61 = scmp.ne.s32.totalorder %s50, %s51
      %p62 = scmp.eq.s32.totalorder %s21, 0
      %p63 = por %p61, %p62
      %p64 = scmp.ne.s32.totalorder %s50, %s51
      %p65 = scmp.eq.s32.totalorder %s22, 1
      %p66 = por %p64, %p65
      %p68 = scmp.ne.s32.totalorder %s51, %s67
      %p69 = scmp.eq.s32.totalorder %s22, 0
      %p70 = por %p68, %p69
      %p71 = scmp.le.s32.totalorder 1, %s16
      %p72 = scmp.lt.s32.totalorder %s16, 3
      %p73 = pnand %p71, %p72
      %p74 = pneg %p73
      // Predicated region
      $region9: #{tpu_custom_call.1} parent=5 // pred_check
        _
      $region10: #{tpu_custom_call.1} parent=5 // pred_check_branch
        %76 = sbr.rel (%p73) target = $region12
      $region11: #{tpu_custom_call.1} parent=5 // pred_region
        %s77 = ssub.s32 %s16, 1
        // Predicated region
        $region13: #{tpu_custom_call.1} parent=11 // pred_check
          %p78 = pneg %p37
        $region14: #{tpu_custom_call.1} parent=11 // pred_check_branch
          %80 = sbr.rel (%p78) target = $region16
        $region15: #{tpu_custom_call.1} parent=11 // pred_region
          %s82 = ssub.s32 256, 256
          %83 = vsyncadd [#allocation5], %s82
          %s84 = sshll.u32 [#allocation4], 4
          %s85 = int_to_ptr.vmem [resolvable:$true] %s84
          %90 = dma.hbm_to_vmem [thread:$0]  %s1, 256, %s85, [#allocation5], 128, 128, 8
        $region16: #{tpu_custom_call.1} parent=11 // pred_fallthru
          _
      $region12: #{tpu_custom_call.1} parent=5 // pred_fallthru
        _
      %p91 = scmp.lt.s32.totalorder %s16, 2
      // Predicated region
      $region17: #{tpu_custom_call.1} parent=5 // pred_check
        %p92 = pneg %p91
      $region18: #{tpu_custom_call.1} parent=5 // pred_check_branch
        %94 = sbr.rel (%p92) target = $region20
      $region19: #{tpu_custom_call.1} parent=5 // pred_region
        _
      $region20: #{tpu_custom_call.1} parent=5 // pred_fallthru
        _
      %p95 = scmp.le.s32.totalorder 1, %s16
      %p96 = scmp.lt.s32.totalorder %s16, 3
      %p97 = pnand %p95, %p96
      %p98 = pneg %p97
      // Predicated region
      $region21: #{tpu_custom_call.1} parent=5 // pred_check
        _
      $region22: #{tpu_custom_call.1} parent=5 // pred_check_branch
        %100 = sbr.rel (%p97) target = $region24
      $region23: #{tpu_custom_call.1} parent=5 // pred_region
        %s101 = ssub.s32 %s16, 1
        // Predicated region
        $region25: #{tpu_custom_call.1} parent=23 // pred_check
          %p102 = pneg %p37
        $region26: #{tpu_custom_call.1} parent=23 // pred_check_branch
          %104 = sbr.rel (%p102) target = $region28
        $region27: #{tpu_custom_call.1} parent=23 // pred_region
          %105 = dma.done [#allocation5], 256
        $region28: #{tpu_custom_call.1} parent=23 // pred_fallthru
          _
        %p106 = pneg %p37
        %p107 = pneg %p34
        %p108 = pneg %p63
        %p109 = pneg %p60
        %s110 = sand.u32 %s50, 1
        %s111 = scalar_lea.sflag [#allocation6], %s110
        %s112 = sand.u32 %s50, 1
        %s113 = smul.addr %s112, 8
        %s114 = scalar_lea.vmem [#allocation7], %s113
        %s115 = smul.u32 %s21, 8
        %s116 = sld [smem:[#allocation3 + %s115]]
        %p117 = scmp.gt.s32.totalorder %s116, 0
        %s118 = scalar_select %p117, %s116, 0
        %p119 = scmp.lt.s32.totalorder %s118, 15
        %s120 = scalar_select %p119, %s118, 15
        %s121 = scalar_lea.vmem [#allocation4], %s120
        %v122 = vld [vmem:[%s121] sm:$0x1]
        %123 = vst [vmem:[%s114] sm:$0x1] %v122
        %s124 = sadd.s32 %s115, 1
        %s125 = sld [smem:[#allocation3 + %s124]]
        %p126 = scmp.gt.s32.totalorder %s125, 0
        %s127 = scalar_select %p126, %s125, 0
        %p128 = scmp.lt.s32.totalorder %s127, 15
        %s129 = scalar_select %p128, %s127, 15
        %s130 = scalar_lea.vmem [#allocation4], %s129
        %v131 = vld [vmem:[%s130] sm:$0x1]
        %132 = vst [vmem:[%s114 + $0x1] sm:$0x1] %v131
        %s133 = sadd.s32 %s115, 2
        %s134 = sld [smem:[#allocation3 + %s133]]
        %p135 = scmp.gt.s32.totalorder %s134, 0
        %s136 = scalar_select %p135, %s134, 0
        %p137 = scmp.lt.s32.totalorder %s136, 15
        %s138 = scalar_select %p137, %s136, 15
        %s139 = scalar_lea.vmem [#allocation4], %s138
        %v140 = vld [vmem:[%s139] sm:$0x1]
        %141 = vst [vmem:[%s114 + $0x2] sm:$0x1] %v140
        %s142 = sadd.s32 %s115, 3
        %s143 = sld [smem:[#allocation3 + %s142]]
        %p144 = scmp.gt.s32.totalorder %s143, 0
        %s145 = scalar_select %p144, %s143, 0
        %p146 = scmp.lt.s32.totalorder %s145, 15
        %s147 = scalar_select %p146, %s145, 15
        %s148 = scalar_lea.vmem [#allocation4], %s147
        %v149 = vld [vmem:[%s148] sm:$0x1]
        %150 = vst [vmem:[%s114 + $0x3] sm:$0x1] %v149
        %s151 = sadd.s32 %s115, 4
        %s152 = sld [smem:[#allocation3 + %s151]]
        %p153 = scmp.gt.s32.totalorder %s152, 0
        %s154 = scalar_select %p153, %s152, 0
        %p155 = scmp.lt.s32.totalorder %s154, 15
        %s156 = scalar_select %p155, %s154, 15
        %s157 = scalar_lea.vmem [#allocation4], %s156
        %v158 = vld [vmem:[%s157] sm:$0x1]
        %159 = vst [vmem:[%s114 + $0x4] sm:$0x1] %v158
        %s160 = sadd.s32 %s115, 5
        %s161 = sld [smem:[#allocation3 + %s160]]
        %p162 = scmp.gt.s32.totalorder %s161, 0
        %s163 = scalar_select %p162, %s161, 0
        %p164 = scmp.lt.s32.totalorder %s163, 15
        %s165 = scalar_select %p164, %s163, 15
        %s166 = scalar_lea.vmem [#allocation4], %s165
        %v167 = vld [vmem:[%s166] sm:$0x1]
        %168 = vst [vmem:[%s114 + $0x5] sm:$0x1] %v167
        %s169 = sadd.s32 %s115, 6
        %s170 = sld [smem:[#allocation3 + %s169]]
        %p171 = scmp.gt.s32.totalorder %s170, 0
        %s172 = scalar_select %p171, %s170, 0
        %p173 = scmp.lt.s32.totalorder %s172, 15
        %s174 = scalar_select %p173, %s172, 15
        %s175 = scalar_lea.vmem [#allocation4], %s174
        %v176 = vld [vmem:[%s175] sm:$0x1]
        %177 = vst [vmem:[%s114 + $0x6] sm:$0x1] %v176
        %s178 = sadd.s32 %s115, 7
        %s179 = sld [smem:[#allocation3 + %s178]]
        %p180 = scmp.gt.s32.totalorder %s179, 0
        %s181 = scalar_select %p180, %s179, 0
        %p182 = scmp.lt.s32.totalorder %s181, 15
        %s183 = scalar_select %p182, %s181, 15
        %s184 = scalar_lea.vmem [#allocation4], %s183
        %v185 = vld [vmem:[%s184] sm:$0x1]
        %186 = vst [vmem:[%s114 + $0x7] sm:$0x1] %v185
        %s187 = sand.u32 %s50, 1
        %s188 = scalar_lea.sflag [#allocation6], %s187
        %s189 = sand.u32 %s50, 1
        %s190 = smul.addr %s189, 8
        %s191 = scalar_lea.vmem [#allocation7], %s190
        // Predicated region
        $region29: #{tpu_custom_call.1} parent=23 // pred_check
          %p192 = pneg %p60
        $region30: #{tpu_custom_call.1} parent=23 // pred_check_branch
          %194 = sbr.rel (%p192) target = $region32
        $region31: #{tpu_custom_call.1} parent=23 // pred_region
          %s196 = ssub.s32 128, 128
          %197 = vsyncadd %s188, %s196
          %s198 = smul.addr %s21, 128
          %s199 = scalar_lea.hbm %s2, %s198
          %s201 = sshll.u32 %s191, 4
          %s202 = int_to_ptr.vmem [resolvable:$true] %s201
          %204 = dma.vmem_to_hbm [thread:$0]  %s202, 128, %s199, %s188
        $region32: #{tpu_custom_call.1} parent=23 // pred_fallthru
          _
      $region24: #{tpu_custom_call.1} parent=5 // pred_fallthru
        _
      %p205 = scmp.le.s32.totalorder 2, %s16
      // Predicated region
      $region33: #{tpu_custom_call.1} parent=5 // pred_check
        %p206 = pneg %p205
      $region34: #{tpu_custom_call.1} parent=5 // pred_check_branch
        %208 = sbr.rel (%p206) target = $region36
      $region35: #{tpu_custom_call.1} parent=5 // pred_region
        %s209 = ssub.s32 %s16, 2
        // Predicated region
        $region37: #{tpu_custom_call.1} parent=35 // pred_check
          %p210 = pneg %p66
        $region38: #{tpu_custom_call.1} parent=35 // pred_check_branch
          %212 = sbr.rel (%p210) target = $region40
        $region39: #{tpu_custom_call.1} parent=35 // pred_region
          %s213 = sand.u32 %s51, 1
          %s214 = scalar_lea.sflag [#allocation6], %s213
          %s215 = sand.u32 %s51, 1
          %s216 = smul.addr %s215, 8
          %s217 = scalar_lea.vmem [#allocation7], %s216
          %218 = dma.done %s214, 128
        $region40: #{tpu_custom_call.1} parent=35 // pred_fallthru
          _
      $region36: #{tpu_custom_call.1} parent=5 // pred_fallthru
        _
    $region6: #{tpu_custom_call.1} parent=1 // loop_footer
      %s20 = sadd.s32 1, %s16
    $region7: #{tpu_custom_call.1} parent=1 // loop_footer_branch
      %15 = sbr.rel target = $region3
    $region8: #{tpu_custom_call.1} parent=1 // loop_exit
      _
    %219 = vsyncpa [#allocation5], 1
    %s220 = scalar_lea.sflag [#allocation5], 1
    %221 = vsyncpa %s220, 1
    %222 = vsyncpa [#allocation6], 1
    %s223 = scalar_lea.sflag [#allocation6], 1
    %224 = vsyncpa %s223, 1

</llo_original>
